<compile_context>
chip_gen: v7x
topology: tpu7x:2x2x1
jax: 0.10.0
libtpu: 0.0.40
codegen_flags: <defaults>
</compile_context>

<pallas_src>
import functools

import jax
import jax.numpy as jnp
from jax.experimental import pallas as pl
from jax.experimental.pallas import tpu as pltpu

ALPHA = 0.25
GAMMA = 2.0  # compile-time 2.0 -> computed as omp * omp (never a float pow)

LANES = 128


def _round_up(x, m):
    return ((x + m - 1) // m) * m


def _focal_kernel(logits_ref, targets_ref, out_ref, acc_ref, *, n_total):
    b = pl.program_id(0)

    @pl.when(b == 0)
    def _init():
        acc_ref[...] = jnp.zeros_like(acc_ref)

    l0 = logits_ref[0].astype(jnp.float32)      # (block_rows, 128) class-0 logits
    l1 = logits_ref[1].astype(jnp.float32)      # (block_rows, 128) class-1 logits
    tgt = targets_ref[...]                      # (block_rows, 128) int32 in {0, 1}

    # Binary cross-entropy specialization: ce = softplus(s) with s the logit
    # margin of the wrong class (s = z for t==0, s = -z for t==1, z = l1 - l0).
    z = l1 - l0
    is0 = tgt == 0
    s = jnp.where(is0, z, -z)
    e = jnp.exp(-jnp.abs(s))                         # single EUP exp, reused below
    ce = jnp.maximum(s, 0.0) + jnp.log(1.0 + e)      # stable softplus(s)
    pt = jnp.where(s >= 0.0, e, 1.0) / (1.0 + e)     # == exp(-ce), no second exp

    at = jnp.where(is0, ALPHA, 1.0 - ALPHA)          # alpha.gather(0, targets)
    omp = 1.0 - pt
    f = at * (omp * omp) * ce                        # focal term, pure VPU

    # Mask out padded samples (N padded to block_rows*128 per grid step).
    br, ln = f.shape
    row = jax.lax.broadcasted_iota(jnp.int32, (br, ln), 0)
    lane = jax.lax.broadcasted_iota(jnp.int32, (br, ln), 1)
    gidx = (b * br + row) * ln + lane
    f = jnp.where(gidx < n_total, f, 0.0)

    # Elementwise accumulation in the steady state; no per-step XLU reduce.
    acc_ref[...] += f

    @pl.when(b == pl.num_programs(0) - 1)
    def _fin():
        out_ref[0, 0] = jnp.sum(acc_ref[...]) / n_total   # .mean()


def weighted_focal_loss(logits, targets, *, block_rows=512):
    """Binary weighted focal loss (alpha=0.25, gamma=2), mean over N samples."""
    n, c = logits.shape
    assert c == 2, "WeightedFocalLoss kernel is specialized for binary (C=2) logits"

    block_rows = _round_up(block_rows, 8)
    rows_total = pl.cdiv(n, LANES)
    if rows_total <= block_rows:               # shrink for small N (single block)
        block_rows = _round_up(rows_total, 8)
    rows_pad = _round_up(rows_total, block_rows)
    n_pad = rows_pad * LANES
    n_blocks = rows_pad // block_rows

    pad = n_pad - n
    logits_p = jnp.pad(logits, ((0, pad), (0, 0)))
    targets_p = jnp.pad(targets.astype(jnp.int32), ((0, pad),))

    # Lane-dense layout: sample index on the 128-lane axis, class index leading.
    logits_t = logits_p.T.reshape(c, rows_pad, LANES)
    targets_t = targets_p.reshape(rows_pad, LANES)

    kernel = functools.partial(_focal_kernel, n_total=n)

    out = pl.pallas_call(
        kernel,
        out_shape=jax.ShapeDtypeStruct((1, 1), jnp.float32),
        grid_spec=pltpu.PrefetchScalarGridSpec(
            num_scalar_prefetch=0,
            grid=(n_blocks,),
            in_specs=[
                pl.BlockSpec((c, block_rows, LANES), lambda b: (0, b, 0)),
                pl.BlockSpec((block_rows, LANES), lambda b: (b, 0)),
            ],
            out_specs=pl.BlockSpec((1, 1), lambda b: (0, 0),
                                   memory_space=pltpu.SMEM),
            scratch_shapes=[pltpu.VMEM((block_rows, LANES), jnp.float32)],
        ),
        compiler_params=pltpu.CompilerParams(
            dimension_semantics=("arbitrary",)),
    )(logits_t, targets_t)
    return out[0, 0]


def _reference(logits, targets):
    # Pure-JAX reference mirroring the PyTorch module.
    logits = logits.astype(jnp.float32)
    lse = jax.scipy.special.logsumexp(logits, axis=-1)
    logit_t = jnp.take_along_axis(
        logits, targets[:, None].astype(jnp.int32), axis=-1)[:, 0]
    ce = lse - logit_t
    at = jnp.where(targets == 0, ALPHA, 1.0 - ALPHA)
    pt = jnp.exp(-ce)
    return jnp.mean(at * (1.0 - pt) ** GAMMA * ce)


if __name__ == "__main__":
    key = jax.random.PRNGKey(0)
    k1, k2 = jax.random.split(key)
    N, C = 2000, 2                               # binary classification logits
    logits = jax.random.normal(k1, (N, C), dtype=jnp.float32)
    targets = jax.random.randint(k2, (N,), 0, 2, dtype=jnp.int32)

    # block_rows=8 keeps the test tiny while still exercising the multi-step
    # grid accumulator and the ragged-tail masking path (2 grid steps here).
    loss = weighted_focal_loss(logits, targets, block_rows=8)
    jax.block_until_ready(loss)

    ref = _reference(logits, targets)
    assert jnp.allclose(loss, ref, rtol=1e-5, atol=1e-5), (loss, ref)
    print("KERNEL_OK")
</pallas_src>

<mosaic_0001>
module attributes {stable_mosaic.version = 11 : i64} {
  func.func @_focal_kernel(%arg0: i32, %arg1: memref<2x8x128xf32, #tpu.memory_space<vmem>>, %arg2: memref<8x128xi32, #tpu.memory_space<vmem>>, %arg3: memref<1x1xf32, #tpu.memory_space<smem>>, %arg4: memref<8x128xf32, #tpu.memory_space<vmem>>) attributes {dimension_semantics = [#tpu.dimension_semantics<arbitrary>], iteration_bounds = array<i64: 2>, scalar_prefetch = 0 : i64, scratch_operands = 1 : i64, tpu.core_type = #tpu.core_type<tc>, window_params = [{transform_indices = @transform_0, window_bounds = array<i64: 2, 8, 128>}, {transform_indices = @transform_1, window_bounds = array<i64: 8, 128>}, {transform_indices = @transform_2, window_bounds = array<i64: 1, 1>}]} {
    %c0_i32 = arith.constant 0 : i32
    %0 = arith.cmpi eq, %arg0, %c0_i32 : i32
    %1 = arith.extui %0 : i1 to i32
    %c0_i32_0 = arith.constant 0 : i32
    %2 = arith.cmpi ne, %1, %c0_i32_0 : i32
    scf.if %2 {
      %cst_23 = arith.constant 0.000000e+00 : f32
      %57 = vector.broadcast %cst_23 : f32 to vector<8x128xf32>
      %c0_24 = arith.constant 0 : index
      %c0_25 = arith.constant 0 : index
      %58 = vector.load %arg4[%c0_24, %c0_25] : memref<8x128xf32, #tpu.memory_space<vmem>>, vector<8x128xf32>
      tpu.vector_store %arg4[%c0_24, %c0_25], %57 {strides = array<i32>} : memref<8x128xf32, #tpu.memory_space<vmem>>, vector<8x128xf32>,
    } else {
    }
    %c0 = arith.constant 0 : index
    %c0_1 = arith.constant 0 : index
    %c0_2 = arith.constant 0 : index
    %3 = vector.load %arg1[%c0, %c0_1, %c0_2] : memref<2x8x128xf32, #tpu.memory_space<vmem>>, vector<1x8x128xf32>
    %4 = vector.shape_cast %3 : vector<1x8x128xf32> to vector<8x128xf32>
    %c1 = arith.constant 1 : index
    %c0_3 = arith.constant 0 : index
    %c0_4 = arith.constant 0 : index
    %5 = vector.load %arg1[%c1, %c0_3, %c0_4] : memref<2x8x128xf32, #tpu.memory_space<vmem>>, vector<1x8x128xf32>
    %6 = vector.shape_cast %5 : vector<1x8x128xf32> to vector<8x128xf32>
    %c0_5 = arith.constant 0 : index
    %c0_6 = arith.constant 0 : index
    %7 = vector.load %arg2[%c0_5, %c0_6] : memref<8x128xi32, #tpu.memory_space<vmem>>, vector<8x128xi32>
    %8 = arith.subf %6, %4 : vector<8x128xf32>
    %c0_i32_7 = arith.constant 0 : i32
    %9 = vector.broadcast %c0_i32_7 : i32 to vector<8x128xi32>
    %10 = arith.cmpi eq, %7, %9 : vector<8x128xi32>
    %cst = arith.constant 0.000000e+00 : f32
    %11 = vector.broadcast %cst : f32 to vector<8x128xf32>
    %12 = arith.subf %11, %8 : vector<8x128xf32>
    %13 = arith.select %10, %8, %12 : vector<8x128xi1>, vector<8x128xf32>
    %14 = math.absf %13 : vector<8x128xf32>
    %cst_8 = arith.constant 0.000000e+00 : f32
    %15 = vector.broadcast %cst_8 : f32 to vector<8x128xf32>
    %16 = arith.subf %15, %14 : vector<8x128xf32>
    %17 = math.exp %16 : vector<8x128xf32>
    %cst_9 = arith.constant 0.000000e+00 : f32
    %18 = vector.broadcast %cst_9 : f32 to vector<8x128xf32>
    %19 = arith.maximumf %13, %18 : vector<8x128xf32>
    %cst_10 = arith.constant 1.000000e+00 : f32
    %20 = vector.broadcast %cst_10 : f32 to vector<8x128xf32>
    %21 = arith.addf %20, %17 : vector<8x128xf32>
    %22 = math.log %21 : vector<8x128xf32>
    %23 = arith.addf %19, %22 : vector<8x128xf32>
    %cst_11 = arith.constant 0.000000e+00 : f32
    %24 = vector.broadcast %cst_11 : f32 to vector<8x128xf32>
    %25 = arith.cmpf oge, %13, %24 : vector<8x128xf32>
    %cst_12 = arith.constant 1.000000e+00 : f32
    %26 = vector.broadcast %cst_12 : f32 to vector<8x128xf32>
    %27 = arith.select %25, %17, %26 : vector<8x128xi1>, vector<8x128xf32>
    %cst_13 = arith.constant 1.000000e+00 : f32
    %28 = vector.broadcast %cst_13 : f32 to vector<8x128xf32>
    %29 = arith.addf %28, %17 : vector<8x128xf32>
    %30 = arith.divf %27, %29 : vector<8x128xf32>
    %cst_14 = arith.constant 2.500000e-01 : f32
    %cst_15 = arith.constant 7.500000e-01 : f32
    %31 = vector.broadcast %cst_14 : f32 to vector<8x128xf32>
    %32 = vector.broadcast %cst_15 : f32 to vector<8x128xf32>
    %33 = arith.select %10, %31, %32 : vector<8x128xi1>, vector<8x128xf32>
    %cst_16 = arith.constant 1.000000e+00 : f32
    %34 = vector.broadcast %cst_16 : f32 to vector<8x128xf32>
    %35 = arith.subf %34, %30 : vector<8x128xf32>
    %36 = arith.mulf %35, %35 : vector<8x128xf32>
    %37 = arith.mulf %33, %36 : vector<8x128xf32>
    %38 = arith.mulf %37, %23 : vector<8x128xf32>
    %39 = tpu.iota {dimensions = array<i32: 0>} : vector<8x128xi32>
    %40 = tpu.iota {dimensions = array<i32: 1>} : vector<8x128xi32>
    %c8_i32 = arith.constant 8 : i32
    %41 = arith.muli %arg0, %c8_i32 : i32
    %42 = vector.broadcast %41 : i32 to vector<8x128xi32>
    %43 = arith.addi %42, %39 : vector<8x128xi32>
    %c128_i32 = arith.constant 128 : i32
    %44 = vector.broadcast %c128_i32 : i32 to vector<8x128xi32>
    %45 = arith.muli %43, %44 : vector<8x128xi32>
    %46 = arith.addi %45, %40 : vector<8x128xi32>
    %c2000_i32 = arith.constant 2000 : i32
    %47 = vector.broadcast %c2000_i32 : i32 to vector<8x128xi32>
    %48 = arith.cmpi slt, %46, %47 : vector<8x128xi32>
    %cst_17 = arith.constant 0.000000e+00 : f32
    %49 = vector.broadcast %cst_17 : f32 to vector<8x128xf32>
    %50 = arith.select %48, %38, %49 : vector<8x128xi1>, vector<8x128xf32>
    %c0_18 = arith.constant 0 : index
    %c0_19 = arith.constant 0 : index
    %51 = vector.load %arg4[%c0_18, %c0_19] : memref<8x128xf32, #tpu.memory_space<vmem>>, vector<8x128xf32>
    %52 = arith.addf %51, %50 : vector<8x128xf32>
    %c0_20 = arith.constant 0 : index
    %c0_21 = arith.constant 0 : index
    %53 = vector.load %arg4[%c0_20, %c0_21] : memref<8x128xf32, #tpu.memory_space<vmem>>, vector<8x128xf32>
    tpu.vector_store %arg4[%c0_20, %c0_21], %52 {strides = array<i32>} : memref<8x128xf32, #tpu.memory_space<vmem>>, vector<8x128xf32>,
    %c1_i32 = arith.constant 1 : i32
    %54 = arith.cmpi eq, %arg0, %c1_i32 : i32
    %55 = arith.extui %54 : i1 to i32
    %c0_i32_22 = arith.constant 0 : i32
    %56 = arith.cmpi ne, %55, %c0_i32_22 : i32
    scf.if %56 {
      %c0_23 = arith.constant 0 : index
      %c0_24 = arith.constant 0 : index
      %57 = vector.load %arg4[%c0_23, %c0_24] : memref<8x128xf32, #tpu.memory_space<vmem>>, vector<8x128xf32>
      %58 = vector.shape_cast %57 : vector<8x128xf32> to vector<1x8x128xf32>
      %cst_25 = arith.constant dense<0.000000e+00> : vector<1xf32>
      %59 = vector.multi_reduction <add>, %58, %cst_25 [1, 2] : vector<1x8x128xf32> to vector<1xf32>
      %60 = vector.shape_cast %59 : vector<1xf32> to vector<1x1x1xf32>
      %61 = vector.extract %60[0, 0, 0] : f32 from vector<1x1x1xf32>
      %cst_26 = arith.constant 2.000000e+03 : f32
      %62 = arith.divf %61, %cst_26 : f32
      %c0_27 = arith.constant 0 : index
      %c0_28 = arith.constant 0 : index
      %63 = memref.load %arg3[%c0_27, %c0_28] : memref<1x1xf32, #tpu.memory_space<smem>>
      memref.store %62, %arg3[%c0_27, %c0_28] : memref<1x1xf32, #tpu.memory_space<smem>>
    } else {
    }
    return
  }
  func.func @transform_0(%arg0: i32) -> (i32, i32, i32) {
    %c0_i32 = arith.constant 0 : i32
    %c0_i32_0 = arith.constant 0 : i32
    %c0_i32_1 = arith.constant 0 : i32
    return %c0_i32, %arg0, %c0_i32_0 : i32, i32, i32
  }
  func.func @transform_1(%arg0: i32) -> (i32, i32) {
    %c0_i32 = arith.constant 0 : i32
    %c0_i32_0 = arith.constant 0 : i32
    return %arg0, %c0_i32 : i32, i32
  }
  func.func @transform_2(%arg0: i32) -> (i32, i32) {
    %c0_i32 = arith.constant 0 : i32
    %c0_i32_0 = arith.constant 0 : i32
    %c0_i32_1 = arith.constant 0 : i32
    return %c0_i32, %c0_i32_0 : i32, i32
  }
}

</mosaic_0001>

<llo_original>
// kernel: tpu_custom_call.1
$region0: #{tpu_custom_call.1}
  #allocation0 [shape = 'u32[]', space=smem, size = 0x4, offset = 0x4, fixed_abs, tag = 'smem constant byte address 0x4 - core index']
  #allocation1 [shape = 'u32[144,128]{1,0:T(1,128)}', space=vmem, size = 0x12000, scoped, tag = 'internal scratch']
  #allocation2 [shape = 'f32[8,128]{1,0:T(8,128)}', space=vmem, size = 0x1000, scoped, tag = 'scratch operand']
  %s0 = inlined_call_operand.hbm [shape: f32[2,16,128], index: 0, kind: input, shape index: {}]
  %s1 = inlined_call_operand.hbm [shape: s32[16,128], index: 1, kind: input, shape index: {}]
  %s2 = inlined_call_operand.hbm [shape: f32[1,1], index: 2, kind: output, shape index: {}]
  %s3 = sld [smem:[#allocation0]]
  $region57: #{tpu_custom_call.1} parent=0
    _
  %s5 = ssub.s32 1, %s3
  %s6 = scalar_select 0, %s5, %s3
  $region1: #{tpu_custom_call.1} parent=0
    #allocation3 [shape = 'u8[16384]{0}', space=vmem, size = 0x4000, scoped, tag = 'input window, operand 0']
    #allocation4 [shape = 's32[2]{0}', space=sflag, size = 0x8, scoped, tag = 'scoped memory for tpu_custom_call.1']
    #allocation5 [shape = 's32[2]{0}', space=sflag, size = 0x8, scoped, tag = 'scoped memory for tpu_custom_call.1']
    #allocation6 [shape = 'u8[8192]{0}', space=vmem, size = 0x2000, scoped, tag = 'input window, operand 1']
    #allocation7 [shape = 's32[2]{0}', space=sflag, size = 0x8, scoped, tag = 'scoped memory for tpu_custom_call.1']
    #allocation8 [shape = 'u8[512]{0}', space=smem, size = 0x200, scoped, tag = 'output window, operand 0, single buffered']
    %7 = vsyncpa [#allocation4], 0
    %s8 = scalar_lea.sflag [#allocation4], 1
    %9 = vsyncpa %s8, 0
    %10 = vsyncpa [#allocation7], 0
    %s11 = scalar_lea.sflag [#allocation7], 1
    %12 = vsyncpa %s11, 0
    %13 = vsyncpa [#allocation5], 0
    loop: start=0, step=1, limit=4
    $region2: #{tpu_custom_call.1} parent=1 // loop_pre_header
      _
    $region3: #{tpu_custom_call.1} parent=1 // loop_header
      %s15 = sphi 0, %s19
      %p16 = scmp.ge.s32.totalorder %s15, 4
      %s25 = sphi 0, %s27
      %s28 = sphi 0, %s25
      %s29 = sphi 0, %s28
      %s45 = sphi 0, %s29
      %s51 = sphi 0, %s53
      %s54 = sphi 0, %s51
      %s55 = sphi 0, %s54
      %s71 = sphi 0, %s55
      %s75 = sphi 0, %s75
      %s77 = sphi 0, %s75
      %s78 = sphi 0, %s77
      %s92 = sphi 0, %s78
    $region4: #{tpu_custom_call.1} parent=1 // loop_header_branch
      %18 = sbr.rel (%p16) target = $region8
    $region5: #{tpu_custom_call.1} parent=1 // loop_body
      %s20 = ssub.s32 %s15, 1
      %s21 = ssub.s32 %s15, 2
      %s22 = sadd.s32 %s15, 1
      %s23 = ssub.s32 %s15, %s22
      %p24 = scmp.eq.s32.totalorder %s23, 0
      %s26 = sadd.s32 %s25, 1
      %s27 = scalar_select %p24, %s25, %s26
      %p30 = pneg %p24
      %p31 = scmp.eq.s32.totalorder %s15, 1
      %p32 = por %p30, %p31
      %p33 = scmp.ne.s32.totalorder %s25, %s28
      %p34 = scmp.eq.s32.totalorder %s15, 0
      %p35 = por %p33, %p34
      %p36 = scmp.ne.s32.totalorder %s25, %s28
      %p37 = scmp.eq.s32.totalorder %s20, 1
      %p38 = por %p36, %p37
      %p39 = scmp.ne.s32.totalorder %s28, %s29
      %p40 = scmp.eq.s32.totalorder %s20, 0
      %p41 = por %p39, %p40
      %p42 = scmp.ne.s32.totalorder %s28, %s29
      %p43 = scmp.eq.s32.totalorder %s21, 1
      %p44 = por %p42, %p43
      %p46 = scmp.ne.s32.totalorder %s29, %s45
      %p47 = scmp.eq.s32.totalorder %s21, 0
      %p48 = por %p46, %p47
      %s49 = ssub.s32 %s15, %s22
      %p50 = scmp.eq.s32.totalorder %s49, 0
      %s52 = sadd.s32 %s51, 1
      %s53 = scalar_select %p50, %s51, %s52
      %p56 = pneg %p50
      %p57 = scmp.eq.s32.totalorder %s15, 1
      %p58 = por %p56, %p57
      %p59 = scmp.ne.s32.totalorder %s51, %s54
      %p60 = scmp.eq.s32.totalorder %s15, 0
      %p61 = por %p59, %p60
      %p62 = scmp.ne.s32.totalorder %s51, %s54
      %p63 = scmp.eq.s32.totalorder %s20, 1
      %p64 = por %p62, %p63
      %p65 = scmp.ne.s32.totalorder %s54, %s55
      %p66 = scmp.eq.s32.totalorder %s20, 0
      %p67 = por %p65, %p66
      %p68 = scmp.ne.s32.totalorder %s54, %s55
      %p69 = scmp.eq.s32.totalorder %s21, 1
      %p70 = por %p68, %p69
      %p72 = scmp.ne.s32.totalorder %s55, %s71
      %p73 = scmp.eq.s32.totalorder %s21, 0
      %p74 = por %p72, %p73
      %s76 = sadd.s32 %s75, 1
      %p79 = scmp.eq.s32.totalorder %s15, 1
      %p80 = scmp.ne.s32.totalorder %s75, %s77
      %p81 = scmp.eq.s32.totalorder %s15, 0
      %p82 = por %p80, %p81
      %p83 = scmp.ne.s32.totalorder %s75, %s77
      %p84 = scmp.eq.s32.totalorder %s20, 1
      %p85 = por %p83, %p84
      %p86 = scmp.ne.s32.totalorder %s77, %s78
      %p87 = scmp.eq.s32.totalorder %s20, 0
      %p88 = por %p86, %p87
      %p89 = scmp.ne.s32.totalorder %s77, %s78
      %p90 = scmp.eq.s32.totalorder %s21, 1
      %p91 = por %p89, %p90
      %p93 = scmp.ne.s32.totalorder %s78, %s92
      %p94 = scmp.eq.s32.totalorder %s21, 0
      %p95 = por %p93, %p94
      %p96 = scmp.le.s32.totalorder 1, %s15
      %p97 = scmp.lt.s32.totalorder %s15, 3
      %p98 = pnand %p96, %p97
      %p99 = pneg %p98
      // Predicated region
      $region9: #{tpu_custom_call.1} parent=5 // pred_check
        _
      $region10: #{tpu_custom_call.1} parent=5 // pred_check_branch
        %101 = sbr.rel (%p98) target = $region12
      $region11: #{tpu_custom_call.1} parent=5 // pred_region
        %s102 = ssub.s32 %s15, 1
      $region12: #{tpu_custom_call.1} parent=5 // pred_fallthru
        _
      %p103 = scmp.lt.s32.totalorder %s15, 2
      // Predicated region
      $region13: #{tpu_custom_call.1} parent=5 // pred_check
        %p104 = pneg %p103
      $region14: #{tpu_custom_call.1} parent=5 // pred_check_branch
        %106 = sbr.rel (%p104) target = $region16
      $region15: #{tpu_custom_call.1} parent=5 // pred_region
        // Predicated region
        $region17: #{tpu_custom_call.1} parent=15 // pred_check
          %p107 = pneg %p35
        $region18: #{tpu_custom_call.1} parent=15 // pred_check_branch
          %109 = sbr.rel (%p107) target = $region20
        $region19: #{tpu_custom_call.1} parent=15 // pred_region
          %s110 = sand.u32 %s25, 1
          %s111 = scalar_lea.sflag [#allocation4], %s110
          %s112 = sand.u32 %s25, 1
          %s113 = smul.addr %s112, 16
          %s114 = scalar_lea.vmem [#allocation3], %s113
          %s116 = ssub.s32 256, 256
          %117 = vsyncadd %s111, %s116
          %s118 = smul.addr %s15, 128
          %s119 = scalar_lea.hbm %s0, %s118
          %s120 = sshll.u32 %s114, 4
          %s121 = int_to_ptr.vmem [resolvable:$true] %s120
          %126 = dma.hbm_to_vmem [thread:$0]  %s119, 256, %s121, %s111, 256, 128, 8
        $region20: #{tpu_custom_call.1} parent=15 // pred_fallthru
          _
        // Predicated region
        $region21: #{tpu_custom_call.1} parent=15 // pred_check
          %p127 = pneg %p61
        $region22: #{tpu_custom_call.1} parent=15 // pred_check_branch
          %129 = sbr.rel (%p127) target = $region24
        $region23: #{tpu_custom_call.1} parent=15 // pred_region
          %s130 = sand.u32 %s51, 1
          %s131 = scalar_lea.sflag [#allocation7], %s130
          %s132 = sand.u32 %s51, 1
          %s133 = smul.addr %s132, 8
          %s134 = scalar_lea.vmem [#allocation6], %s133
          %s136 = ssub.s32 128, 128
          %137 = vsyncadd %s131, %s136
          %s138 = smul.addr %s15, 128
          %s139 = scalar_lea.hbm %s1, %s138
          %s141 = sshll.u32 %s134, 4
          %s142 = int_to_ptr.vmem [resolvable:$true] %s141
          %144 = dma.hbm_to_vmem [thread:$0]  %s139, 128, %s142, %s131
        $region24: #{tpu_custom_call.1} parent=15 // pred_fallthru
          _
      $region16: #{tpu_custom_call.1} parent=5 // pred_fallthru
        _
      %p145 = scmp.le.s32.totalorder 1, %s15
      %p146 = scmp.lt.s32.totalorder %s15, 3
      %p147 = pnand %p145, %p146
      %p148 = pneg %p147
      // Predicated region
      $region25: #{tpu_custom_call.1} parent=5 // pred_check
        _
      $region26: #{tpu_custom_call.1} parent=5 // pred_check_branch
        %150 = sbr.rel (%p147) target = $region28
      $region27: #{tpu_custom_call.1} parent=5 // pred_region
        %s151 = ssub.s32 %s15, 1
        %s152 = sand.u32 %s28, 1
        %s153 = scalar_lea.sflag [#allocation4], %s152
        %s154 = sand.u32 %s28, 1
        %s155 = smul.addr %s154, 16
        %s156 = scalar_lea.vmem [#allocation3], %s155
        // Predicated region
        $region29: #{tpu_custom_call.1} parent=27 // pred_check
          %p157 = pneg %p41
        $region30: #{tpu_custom_call.1} parent=27 // pred_check_branch
          %159 = sbr.rel (%p157) target = $region32
        $region31: #{tpu_custom_call.1} parent=27 // pred_region
          %160 = dma.done %s153, 256
        $region32: #{tpu_custom_call.1} parent=27 // pred_fallthru
          _
        %s161 = sand.u32 %s54, 1
        %s162 = scalar_lea.sflag [#allocation7], %s161
        %s163 = sand.u32 %s54, 1
        %s164 = smul.addr %s163, 8
        %s165 = scalar_lea.vmem [#allocation6], %s164
        // Predicated region
        $region33: #{tpu_custom_call.1} parent=27 // pred_check
          %p166 = pneg %p67
        $region34: #{tpu_custom_call.1} parent=27 // pred_check_branch
          %168 = sbr.rel (%p166) target = $region36
        $region35: #{tpu_custom_call.1} parent=27 // pred_region
          %169 = dma.done %s162, 128
        $region36: #{tpu_custom_call.1} parent=27 // pred_fallthru
          _
        %s170 = sand.u32 %s28, 1
        %s171 = scalar_lea.sflag [#allocation4], %s170
        %s172 = sand.u32 %s28, 1
        %s173 = smul.addr %s172, 16
        %s174 = scalar_lea.vmem [#allocation3], %s173
        %p175 = pneg %p41
        %p176 = pneg %p38
        %s177 = sand.u32 %s54, 1
        %s178 = scalar_lea.sflag [#allocation7], %s177
        %s179 = sand.u32 %s54, 1
        %s180 = smul.addr %s179, 8
        %s181 = scalar_lea.vmem [#allocation6], %s180
        %p182 = pneg %p67
        %p183 = pneg %p64
        %p184 = pneg %p88
        %p185 = pneg %p85
        %p186 = scmp.eq.s32.totalorder %s20, 0
        // Predicated region
        $region37: #{tpu_custom_call.1} parent=27 // pred_check
          %p187 = pneg %p186
        $region38: #{tpu_custom_call.1} parent=27 // pred_check_branch
          %189 = sbr.rel (%p187) target = $region40
        $region39: #{tpu_custom_call.1} parent=27 // pred_region
          %190 = vst [vmem:[#allocation2] sm:$0xff] 0.0
        $region40: #{tpu_custom_call.1} parent=27 // pred_fallthru
          _
        %v191 = vld [vmem:[%s156] sm:$0xff]
        %s192 = scalar_lea.vmem %s156, 8 [#allocation3]
        %v193 = vld [vmem:[%s192] sm:$0xff]
        %v194 = vld [vmem:[%s165] sm:$0xff]
        %v195 = vsub.f32 %v193, %v191
        %vm196 = vcmp.eq.s32.totalorder %v194, 0
        %v197 = vsub.f32 0.0, %v195
        %v198 = vsel %vm196, %v195, %v197
        %v199 = vand.u32 2147483647, %v198
        %v200 = vsub.f32 0.0, %v199
        %v201 = vmul.f32 %v200, 1.442695
        %v202 = vpow.pop %v201
        %v203 = vmax.f32 %v198, 0.0
        %v204 = vadd.f32 %v202, 1.0
        %v205 = vlog2.pop %v204
        %v206 = vmul.f32 %v205, 0.6931472
        %v207 = vadd.f32 %v203, %v206
        %vm208 = vcmp.ge.f32.partialorder %v198, 0.0
        %v209 = vsel %vm208, %v202, 1.0
        %v210 = vrcp.pop %v204
        %v211 = vmul.f32 %v209, %v210
        %v212 = vsel %vm196, 0.25, 0.75
        %v213 = vsub.f32 1.0, %v211
        %v214 = vmul.f32 %v213, %v213
        %v215 = vmul.f32 %v212, %v214
        %v216 = vmul.f32 %v215, %v207
        %v217 = vlaneseq
        %v218 = vshrl.u32 %v217, 7
        %v219 = vlaneseq
        %v220 = vand.u32 %v219, 127
        %s221 = smul.u32 %s20, 8
        %v222 = vstv %s221
        %v223 = vadd.s32 %v222, %v218
        %v224 = vmul.u32 %v223, 128
        %v225 = vadd.s32 %v224, %v220
        %vm226 = vcmp.lt.s32.totalorder %v225, 2000
        %v227 = vsel %vm226, %v216, 0.0
        %v228 = vld [vmem:[#allocation2] sm:$0xff]
        %v229 = vadd.f32 %v228, %v227
        %230 = vst [vmem:[#allocation2] sm:$0xff] %v229
        %p231 = scmp.eq.s32.totalorder %s20, 1
        // Predicated region
        $region41: #{tpu_custom_call.1} parent=27 // pred_check
          %p232 = pneg %p231
        $region42: #{tpu_custom_call.1} parent=27 // pred_check_branch
          %234 = sbr.rel (%p232) target = $region44
        $region43: #{tpu_custom_call.1} parent=27 // pred_region
          %v235 = vld [vmem:[#allocation2] sm:$0xff]
          %236 = vadd.xlane.f32.xlu0 %v235
          %v237 = vpop.xlane.xlu0 %236
          %v238 = vrot.slane %v237, 4
          %v239 = vadd.f32 %v237, %v238
          %v240 = vrot.slane %v239, 2
          %v241 = vadd.f32 %v239, %v240
          %v242 = vrot.slane %v241, 1
          %v243 = vadd.f32 %v241, %v242
          %s244 = vtos %v243
          %v245 = vrcp.pop 2000.0
          %s246 = vtos %v245
          %s247 = smul.f32 %s244, %s246
          %s248 = scalar_lea.smem [#allocation8], 0
          %249 = sst [smem:[%s248]] %s247
        $region44: #{tpu_custom_call.1} parent=27 // pred_fallthru
          _
        // Predicated region
        $region45: #{tpu_custom_call.1} parent=27 // pred_check
          %p250 = pneg %p85
        $region46: #{tpu_custom_call.1} parent=27 // pred_check_branch
          %252 = sbr.rel (%p250) target = $region48
        $region47: #{tpu_custom_call.1} parent=27 // pred_region
          %s254 = ssub.s32 16, 16
          %255 = vsyncadd [#allocation5], %s254
          %258 = dma.smem_to_hbm [#allocation8], 16, %s2, [#allocation5]
        $region48: #{tpu_custom_call.1} parent=27 // pred_fallthru
          _
        // Predicated region
        $region49: #{tpu_custom_call.1} parent=27 // pred_check
          %p259 = pneg %p85
        $region50: #{tpu_custom_call.1} parent=27 // pred_check_branch
          %261 = sbr.rel (%p259) target = $region52
        $region51: #{tpu_custom_call.1} parent=27 // pred_region
          %262 = dma.done [#allocation5], 16
        $region52: #{tpu_custom_call.1} parent=27 // pred_fallthru
          _
        %263 = sfence
      $region28: #{tpu_custom_call.1} parent=5 // pred_fallthru
        _
      %p264 = scmp.le.s32.totalorder 2, %s15
      // Predicated region
      $region53: #{tpu_custom_call.1} parent=5 // pred_check
        %p265 = pneg %p264
      $region54: #{tpu_custom_call.1} parent=5 // pred_check_branch
        %267 = sbr.rel (%p265) target = $region56
      $region55: #{tpu_custom_call.1} parent=5 // pred_region
        %s268 = ssub.s32 %s15, 2
      $region56: #{tpu_custom_call.1} parent=5 // pred_fallthru
        _
    $region6: #{tpu_custom_call.1} parent=1 // loop_footer
      %s19 = sadd.s32 1, %s15
    $region7: #{tpu_custom_call.1} parent=1 // loop_footer_branch
      %14 = sbr.rel target = $region3
    $region8: #{tpu_custom_call.1} parent=1 // loop_exit
      _
    %269 = vsyncpa [#allocation4], 1
    %s270 = scalar_lea.sflag [#allocation4], 1
    %271 = vsyncpa %s270, 1
    %272 = vsyncpa [#allocation7], 1
    %s273 = scalar_lea.sflag [#allocation7], 1
    %274 = vsyncpa %s273, 1
    %275 = vsyncpa [#allocation5], 1
    %s276 = scalar_lea.sflag [#allocation5], 1
    %277 = vsyncpa %s276, 1

</llo_original>
